<compile_context>
chip_gen: v5e
topology: v5e:2x2
jax: 0.10.0
libtpu: 0.0.40
codegen_flags: <defaults>
</compile_context>

<pallas_src>
import jax
import jax.numpy as jnp
from jax.experimental import pallas as pl
from jax.experimental.pallas import tpu as pltpu

LANE = 128


def _round_up(v: int, m: int) -> int:
    return ((v + m - 1) // m) * m


def _device_kind() -> str:
    try:
        return jax.devices()[0].device_kind.lower()
    except Exception:
        return ""


def _default_elementwise_dtype():
    # v6e/v7x VPUs have a bf16 path -> halve vector traffic; keep f32 elsewhere
    # (v5e has no bf16 VPU path).
    kind = _device_kind()
    return jnp.bfloat16 if ("v6" in kind or "v7" in kind) else jnp.float32


def _default_min_blocks() -> int:
    # v7x: 2 TensorCores per chip -> make sure the "parallel" batch axis has at
    # least 2 blocks to shard; harmless (and skipped for tiny batches) elsewhere.
    kind = _device_kind()
    return 2 if ("v7" in kind) else 1


def _choose_tiling(batch: int, tm_max: int, min_blocks: int):
    """Adaptive row tile: bound padding waste, keep >= min_blocks grid steps."""
    tm_max = max(128, _round_up(tm_max, 128))
    nblocks = max(pl.cdiv(batch, tm_max), min_blocks)
    nblocks = max(1, min(nblocks, pl.cdiv(batch, 8)))   # >= 8 useful rows/block
    tm = _round_up(pl.cdiv(batch, nblocks), 8)
    if nblocks > 1:
        # Multi-block lane-dense output blocks must be 128-lane aligned.
        tm = _round_up(tm, LANE)
        nblocks = pl.cdiv(batch, tm)
    if nblocks == 1:
        tm = _round_up(batch, 8)
    return tm, nblocks, nblocks * tm


def _make_critic_kernel(activation: str, ew_dtype):
    """Fused 3-layer MLP critic: (Linear -> act) x2 -> Linear(1), lane-dense out."""
    use_tanh = activation.lower() == "tanh"

    def act(v):
        return jnp.tanh(v) if use_tanh else jnp.maximum(v, 0)

    def kernel(x_ref, w1_ref, b1_ref, w2_ref, b2_ref, w3_ref, b3_ref, out_ref):
        # In-kernel bf16 cast of the streamed f32 x tile (one VPU op; avoids
        # wrapper-side HBM cast/pad passes).
        x = x_ref[...].astype(jnp.bfloat16)                         # (TM, D)

        # Layer 1: bf16 MXU matmul, f32 accumulate; bias + act in ew dtype.
        h = jnp.dot(x, w1_ref[...], preferred_element_type=jnp.float32)
        h = act(h.astype(ew_dtype) + b1_ref[...])                   # (TM, H1P)

        # Layer 2.
        h = jnp.dot(h.astype(jnp.bfloat16), w2_ref[...],
                    preferred_element_type=jnp.float32)
        h = act(h.astype(ew_dtype) + b2_ref[...])                   # (TM, H2P)

        # Output head (N=1): run on the (slack) MXU as an NT matmul so the
        # result is already lane-dense: (8, H2P) x (TM, H2P)^T -> (8, TM),
        # real weights live in row 0, rows 1..7 are zero.
        v = jax.lax.dot_general(
            w3_ref[...], h.astype(jnp.bfloat16),
            dimension_numbers=(((1,), (1,)), ((), ())),
            preferred_element_type=jnp.float32)                     # (8, TM)
        out_ref[...] = (v[0:1, :] + b3_ref[0, 0]).astype(out_ref.dtype)

    return kernel


def init_ppo_critic_params(key, input_dim, hidden_dims):
    """Logical (PyTorch-equivalent) params: [(W:[in,out] f32, b:[out] f32), ...].

    Xavier-uniform weights, zero biases (matches PPOCriticNetwork._init_weights).
    """
    dims = [input_dim] + list(hidden_dims) + [1]
    params = []
    for i in range(len(dims) - 1):
        key, sub = jax.random.split(key)
        fan_in, fan_out = dims[i], dims[i + 1]
        bound = float(jnp.sqrt(6.0 / (fan_in + fan_out)))
        w = jax.random.uniform(sub, (fan_in, fan_out), dtype=jnp.float32,
                               minval=-bound, maxval=bound)
        b = jnp.zeros((fan_out,), dtype=jnp.float32)
        params.append((w, b))
    return params


def prepare_kernel_params(params, elementwise_dtype=None):
    """Pad hidden dims to 128 lanes, bf16 weights, biases in elementwise dtype."""
    if elementwise_dtype is None:
        elementwise_dtype = _default_elementwise_dtype()
    (w1, b1), (w2, b2), (w3, b3) = params
    d, h1 = w1.shape
    h2 = w2.shape[1]
    h1p = _round_up(h1, LANE)
    h2p = _round_up(h2, LANE)

    w1p = jnp.zeros((d, h1p), jnp.float32).at[:, :h1].set(w1).astype(jnp.bfloat16)
    b1p = jnp.zeros((1, h1p), jnp.float32).at[0, :h1].set(b1).astype(elementwise_dtype)
    w2p = jnp.zeros((h1p, h2p), jnp.float32).at[:h1, :h2].set(w2).astype(jnp.bfloat16)
    b2p = jnp.zeros((1, h2p), jnp.float32).at[0, :h2].set(b2).astype(elementwise_dtype)
    # Head weights as an (8, H2P) bf16 slab (row 0 real, rows 1..7 zero) so the
    # head runs as a well-shaped NT MXU matmul producing a lane-dense row.
    w3row = jnp.zeros((8, h2p), jnp.float32).at[0, :h2].set(w3[:, 0]).astype(jnp.bfloat16)
    b3s = b3.reshape(1, 1).astype(jnp.float32)             # SMEM scalar

    return {"w1": w1p, "b1": b1p, "w2": w2p, "b2": b2p,
            "w3": w3row, "b3": b3s, "dims": (d, h1p, h2p)}


def _vmem_limit_bytes(tm, d, h1p, h2p, ew_bytes):
    resident = d * h1p * 2 + h1p * h2p * 2 + (h1p + h2p) * ew_bytes + 8 * h2p * 2
    streamed = 2 * tm * d * 4 + 2 * tm * 4             # double-buffered x + out tiles
    live = tm * (h1p + h2p) * (4 + ew_bytes + 2)       # f32 dot-out + ew act + bf16 copy
    total = resident + streamed + live
    return int(min(max(4 * 1024 * 1024, 2 * total), 128 * 1024 * 1024))


def ppo_critic_forward(x, kparams, *, activation="relu", tm_max=1024,
                       min_blocks=None):
    """Runs the fused Pallas kernel; returns values of shape (batch,)."""
    d, h1p, h2p = kparams["dims"]
    w1, b1 = kparams["w1"], kparams["b1"]
    w2, b2 = kparams["w2"], kparams["b2"]
    w3, b3 = kparams["w3"], kparams["b3"]
    ew_dtype = b1.dtype
    ew_bytes = jnp.dtype(ew_dtype).itemsize

    batch = x.shape[0]
    if min_blocks is None:
        min_blocks = _default_min_blocks()
    tm, nblocks, padded_batch = _choose_tiling(batch, tm_max, min_blocks)

    # Advisory cost estimate so XLA overlaps this call with surrounding work.
    flops = 2 * padded_batch * (d * h1p + h1p * h2p + 8 * h2p)
    transcendentals = padded_batch * (h1p + h2p) if activation.lower() == "tanh" else 0
    bytes_accessed = (batch * d * x.dtype.itemsize          # x (single pass)
                      + w1.size * 2 + w2.size * 2 + w3.size * 2
                      + (b1.size + b2.size) * ew_bytes + b3.size * 4
                      + padded_batch * 4)                    # output (f32)
    cost = pl.CostEstimate(flops=int(flops), transcendentals=int(transcendentals),
                           bytes_accessed=int(bytes_accessed))

    out = pl.pallas_call(
        _make_critic_kernel(activation, ew_dtype),
        out_shape=jax.ShapeDtypeStruct((1, padded_batch), jnp.float32),
        grid=(nblocks,),
        in_specs=[
            pl.BlockSpec((tm, d), lambda i: (i, 0)),            # x tile (f32, streamed)
            pl.BlockSpec((d, h1p), lambda i: (0, 0)),           # w1 (resident)
            pl.BlockSpec((1, h1p), lambda i: (0, 0)),           # b1 (resident)
            pl.BlockSpec((h1p, h2p), lambda i: (0, 0)),         # w2 (resident)
            pl.BlockSpec((1, h2p), lambda i: (0, 0)),           # b2 (resident)
            pl.BlockSpec((8, h2p), lambda i: (0, 0)),           # w3 slab (resident)
            pl.BlockSpec(memory_space=pltpu.MemorySpace.SMEM),  # b3 scalar
        ],
        out_specs=pl.BlockSpec((1, tm), lambda i: (0, i)),      # lane-dense output
        compiler_params=pltpu.CompilerParams(
            dimension_semantics=("parallel",),
            vmem_limit_bytes=_vmem_limit_bytes(tm, d, h1p, h2p, ew_bytes),
        ),
        cost_estimate=cost,
    )(x, w1, b1, w2, b2, w3, b3)

    # Drop batch padding and squeeze the value dim (matches value.squeeze(-1)).
    return out[0, :batch]


# TODO(synk): nn.Dropout with dropout > 0 (training-mode RNG masking) is not
# implemented; this kernel covers the dropout=0 / eval forward path only.


if __name__ == "__main__":
    # Small, PyTorch-consistent shapes: batch=8, input_dim=32, hidden_dims=[64, 32]
    batch, input_dim = 8, 32
    hidden_dims = [64, 32]

    key = jax.random.PRNGKey(0)
    key, xkey = jax.random.split(key)
    x = jax.random.normal(xkey, (batch, input_dim), dtype=jnp.float32)

    params = init_ppo_critic_params(key, input_dim, hidden_dims)
    kparams = prepare_kernel_params(params)

    value = ppo_critic_forward(x, kparams)
    jax.block_until_ready(value)

    # Pure-JAX reference mirroring the same quantization (bf16 weights/activations,
    # f32 accumulate, elementwise in the same dtype the kernel uses).
    ew = kparams["b1"].dtype
    xr = x.astype(jnp.bfloat16).astype(jnp.float32)
    w1f = kparams["w1"].astype(jnp.float32)
    w2f = kparams["w2"].astype(jnp.float32)
    w3f = kparams["w3"][0].astype(jnp.float32)          # real head vector (row 0)
    h = xr @ w1f
    h = jnp.maximum(h.astype(ew) + kparams["b1"], 0)
    h = h.astype(jnp.bfloat16).astype(jnp.float32) @ w2f
    h = jnp.maximum(h.astype(ew) + kparams["b2"], 0)
    hb = h.astype(jnp.bfloat16).astype(jnp.float32)
    ref = hb @ w3f + kparams["b3"][0, 0]                 # (batch,)

    assert value.shape == (batch,)
    max_err = jnp.max(jnp.abs(value - ref))
    # Accumulation-order differences only (all quantization is mirrored).
    assert jnp.allclose(value, ref, atol=2e-2, rtol=2e-2), f"max abs err {max_err}"

    print("KERNEL_OK")
</pallas_src>

<mosaic_0001>
module attributes {stable_mosaic.version = 11 : i64} {
  func.func @kernel(%arg0: i32, %arg1: memref<8x32xf32, #tpu.memory_space<vmem>>, %arg2: memref<32x128xbf16, #tpu.memory_space<vmem>>, %arg3: memref<1x128xf32, #tpu.memory_space<vmem>>, %arg4: memref<128x128xbf16, #tpu.memory_space<vmem>>, %arg5: memref<1x128xf32, #tpu.memory_space<vmem>>, %arg6: memref<8x128xbf16, #tpu.memory_space<vmem>>, %arg7: memref<1x1xf32, #tpu.memory_space<smem>>, %arg8: memref<1x8xf32, #tpu.memory_space<vmem>>) attributes {dimension_semantics = [#tpu.dimension_semantics<parallel>], iteration_bounds = array<i64: 1>, scalar_prefetch = 0 : i64, scratch_operands = 0 : i64, tpu.core_type = #tpu.core_type<tc>, window_params = [{transform_indices = @transform_0, window_bounds = array<i64: 8, 32>}, {pipeline_mode = #tpu.pipeline_mode<synchronous>, transform_indices = @transform_1, window_bounds = array<i64: 32, 128>}, {pipeline_mode = #tpu.pipeline_mode<synchronous>, transform_indices = @transform_2, window_bounds = array<i64: 1, 128>}, {pipeline_mode = #tpu.pipeline_mode<synchronous>, transform_indices = @transform_3, window_bounds = array<i64: 128, 128>}, {pipeline_mode = #tpu.pipeline_mode<synchronous>, transform_indices = @transform_4, window_bounds = array<i64: 1, 128>}, {pipeline_mode = #tpu.pipeline_mode<synchronous>, transform_indices = @transform_5, window_bounds = array<i64: 8, 128>}, {transform_indices = @transform_6, window_bounds = array<i64: 1, 1>}, {transform_indices = @transform_7, window_bounds = array<i64: 1, 8>}]} {
    %c0 = arith.constant 0 : index
    %c0_0 = arith.constant 0 : index
    %0 = vector.load %arg1[%c0, %c0_0] : memref<8x32xf32, #tpu.memory_space<vmem>>, vector<8x32xf32>
    %1 = arith.truncf %0 : vector<8x32xf32> to vector<8x32xbf16>
    %c0_1 = arith.constant 0 : index
    %c0_2 = arith.constant 0 : index
    %2 = vector.load %arg2[%c0_1, %c0_2] : memref<32x128xbf16, #tpu.memory_space<vmem>>, vector<32x128xbf16>
    %cst = arith.constant dense<0.000000e+00> : vector<8x128xf32>
    %3 = tpu.matmul %1, %2, %cst {dimension_numbers = #tpu.dot_dimension_numbers<[1], [0], [0], [1], [0, 0, 1, 1], [], []>} : vector<8x32xbf16>, vector<32x128xbf16>, vector<8x128xf32> -> vector<8x128xf32>
    %c0_3 = arith.constant 0 : index
    %c0_4 = arith.constant 0 : index
    %4 = vector.load %arg3[%c0_3, %c0_4] : memref<1x128xf32, #tpu.memory_space<vmem>>, vector<1x128xf32>
    %5 = vector.broadcast %4 : vector<1x128xf32> to vector<8x128xf32>
    %6 = arith.addf %3, %5 : vector<8x128xf32>
    %cst_5 = arith.constant 0.000000e+00 : f32
    %7 = vector.broadcast %cst_5 : f32 to vector<8x128xf32>
    %8 = arith.maximumf %6, %7 : vector<8x128xf32>
    %9 = arith.truncf %8 : vector<8x128xf32> to vector<8x128xbf16>
    %c0_6 = arith.constant 0 : index
    %c0_7 = arith.constant 0 : index
    %10 = vector.load %arg4[%c0_6, %c0_7] : memref<128x128xbf16, #tpu.memory_space<vmem>>, vector<128x128xbf16>
    %cst_8 = arith.constant dense<0.000000e+00> : vector<8x128xf32>
    %11 = tpu.matmul %9, %10, %cst_8 {dimension_numbers = #tpu.dot_dimension_numbers<[1], [0], [0], [1], [0, 0, 1, 1], [], []>} : vector<8x128xbf16>, vector<128x128xbf16>, vector<8x128xf32> -> vector<8x128xf32>
    %c0_9 = arith.constant 0 : index
    %c0_10 = arith.constant 0 : index
    %12 = vector.load %arg5[%c0_9, %c0_10] : memref<1x128xf32, #tpu.memory_space<vmem>>, vector<1x128xf32>
    %13 = vector.broadcast %12 : vector<1x128xf32> to vector<8x128xf32>
    %14 = arith.addf %11, %13 : vector<8x128xf32>
    %cst_11 = arith.constant 0.000000e+00 : f32
    %15 = vector.broadcast %cst_11 : f32 to vector<8x128xf32>
    %16 = arith.maximumf %14, %15 : vector<8x128xf32>
    %c0_12 = arith.constant 0 : index
    %c0_13 = arith.constant 0 : index
    %17 = vector.load %arg6[%c0_12, %c0_13] : memref<8x128xbf16, #tpu.memory_space<vmem>>, vector<8x128xbf16>
    %18 = arith.truncf %16 : vector<8x128xf32> to vector<8x128xbf16>
    %cst_14 = arith.constant dense<0.000000e+00> : vector<8x8xf32>
    %19 = tpu.matmul %17, %18, %cst_14 {dimension_numbers = #tpu.dot_dimension_numbers<[1], [1], [0], [0], [0, 0, 1, 0], [], []>} : vector<8x128xbf16>, vector<8x128xbf16>, vector<8x8xf32> -> vector<8x8xf32>
    %20 = vector.extract_strided_slice %19 {offsets = [0, 0], sizes = [1, 8], strides = [1, 1]} : vector<8x8xf32> to vector<1x8xf32>
    %c0_15 = arith.constant 0 : index
    %c0_16 = arith.constant 0 : index
    %21 = memref.load %arg7[%c0_15, %c0_16] : memref<1x1xf32, #tpu.memory_space<smem>>
    %22 = vector.broadcast %21 : f32 to vector<1x8xf32>
    %23 = arith.addf %20, %22 : vector<1x8xf32>
    %c0_17 = arith.constant 0 : index
    %c0_18 = arith.constant 0 : index
    %24 = vector.load %arg8[%c0_17, %c0_18] : memref<1x8xf32, #tpu.memory_space<vmem>>, vector<1x8xf32>
    tpu.vector_store %arg8[%c0_17, %c0_18], %23 {strides = array<i32>} : memref<1x8xf32, #tpu.memory_space<vmem>>, vector<1x8xf32>,
    return
  }
  func.func @transform_0(%arg0: i32) -> (i32, i32) {
    %c0_i32 = arith.constant 0 : i32
    %c0_i32_0 = arith.constant 0 : i32
    return %arg0, %c0_i32 : i32, i32
  }
  func.func @transform_1(%arg0: i32) -> (i32, i32) {
    %c0_i32 = arith.constant 0 : i32
    %c0_i32_0 = arith.constant 0 : i32
    %c0_i32_1 = arith.constant 0 : i32
    return %c0_i32, %c0_i32_0 : i32, i32
  }
  func.func @transform_2(%arg0: i32) -> (i32, i32) {
    %c0_i32 = arith.constant 0 : i32
    %c0_i32_0 = arith.constant 0 : i32
    %c0_i32_1 = arith.constant 0 : i32
    return %c0_i32, %c0_i32_0 : i32, i32
  }
  func.func @transform_3(%arg0: i32) -> (i32, i32) {
    %c0_i32 = arith.constant 0 : i32
    %c0_i32_0 = arith.constant 0 : i32
    %c0_i32_1 = arith.constant 0 : i32
    return %c0_i32, %c0_i32_0 : i32, i32
  }
  func.func @transform_4(%arg0: i32) -> (i32, i32) {
    %c0_i32 = arith.constant 0 : i32
    %c0_i32_0 = arith.constant 0 : i32
    %c0_i32_1 = arith.constant 0 : i32
    return %c0_i32, %c0_i32_0 : i32, i32
  }
  func.func @transform_5(%arg0: i32) -> (i32, i32) {
    %c0_i32 = arith.constant 0 : i32
    %c0_i32_0 = arith.constant 0 : i32
    %c0_i32_1 = arith.constant 0 : i32
    return %c0_i32, %c0_i32_0 : i32, i32
  }
  func.func @transform_6(%arg0: i32) -> (i32, i32) {
    %c0_i32 = arith.constant 0 : i32
    %c0_i32_0 = arith.constant 0 : i32
    %c0_i32_1 = arith.constant 0 : i32
    return %c0_i32, %c0_i32_0 : i32, i32
  }
  func.func @transform_7(%arg0: i32) -> (i32, i32) {
    %c0_i32 = arith.constant 0 : i32
    %c0_i32_0 = arith.constant 0 : i32
    return %c0_i32, %arg0 : i32, i32
  }
}

</mosaic_0001>

<llo_original>
// kernel: tpu_custom_call.1
$region0: #{tpu_custom_call.1}
  #allocation0 [shape = 'u32[]', space=smem, size = 0x4, offset = 0x4, fixed_abs, tag = 'smem constant byte address 0x4 - core index']
  #allocation1 [shape = 'u32[72,128]{1,0:T(1,128)}', space=vmem, size = 0x9000, scoped, tag = 'internal scratch']
  #allocation2 [shape = 'f32[1,1]{1,0:T(1,128)S(6)}', space=smem, size = 0x200, scoped, tag = 'scoped memory for tpu_custom_call.1']
  %s0 = inlined_call_operand.hbm [shape: f32[8,32], index: 0, kind: input, shape index: {}]
  %s1 = inlined_call_operand.hbm [shape: bf16[32,128], index: 1, kind: input, shape index: {}]
  %s2 = inlined_call_operand.vmem [shape: f32[1,128], index: 2, kind: input, shape index: {}]
  %s3 = inlined_call_operand.hbm [shape: bf16[128,128], index: 3, kind: input, shape index: {}]
  %s4 = inlined_call_operand.vmem [shape: f32[1,128], index: 4, kind: input, shape index: {}]
  %s5 = inlined_call_operand.vmem [shape: bf16[8,128], index: 5, kind: input, shape index: {}]
  %s6 = inlined_call_operand.<no memory space> [shape: f32[1,1], index: 6, kind: input, shape index: {}]
  %s7 = inlined_call_operand.hbm [shape: f32[1,8], index: 7, kind: output, shape index: {}]
  %s8 = sld [smem:[#allocation0]]
  $region50: #{tpu_custom_call.1} parent=0
    _
  %s10 = ssub.s32 1, %s8
  %s11 = scalar_select 0, %s10, %s8
  %12 = sst [smem:[#allocation2]] %s6
  $region1: #{tpu_custom_call.1} parent=0
    #allocation3 [shape = 'u8[4096]{0}', space=vmem, size = 0x1000, scoped, tag = 'input window, operand 0, single buffered']
    #allocation4 [shape = 's32[1]{0}', space=sflag, size = 0x4, scoped, tag = 'scoped memory for tpu_custom_call.1']
    #allocation5 [shape = 's32[1]{0}', space=sflag, size = 0x4, scoped, tag = 'scoped memory for tpu_custom_call.1']
    #allocation6 [shape = 'u8[8192]{0}', space=vmem, size = 0x2000, scoped, tag = 'input window, operand 1, single buffered']
    #allocation7 [shape = 's32[1]{0}', space=sflag, size = 0x4, scoped, tag = 'scoped memory for tpu_custom_call.1']
    #allocation8 [shape = 'u8[32768]{0}', space=vmem, size = 0x8000, scoped, tag = 'input window, operand 3, single buffered']
    #allocation9 [shape = 'u8[512]{0}', space=vmem, size = 0x400, scoped, tag = 'output window, operand 0, single buffered']
    %13 = vsyncpa [#allocation4], 0
    %14 = vsyncpa [#allocation7], 0
    %15 = vsyncpa [#allocation5], 0
    // Predicated region
    $region2: #{tpu_custom_call.1} parent=1 // pred_check
      _
    $region3: #{tpu_custom_call.1} parent=1 // pred_check_branch
      %17 = sbr.rel (0) target = $region5
    $region4: #{tpu_custom_call.1} parent=1 // pred_region
      %19 = vsyncadd [#allocation4], 0
      %s21 = sshll.u32 %s0, 4
      %s22 = int_to_ptr.hbm [resolvable:$true] %s21
      %s23 = sshll.u32 [#allocation3], 4
      %s24 = int_to_ptr.vmem [resolvable:$true] %s23
      %26 = dma.hbm_to_vmem [thread:$0]  %s22, 128, %s24, [#allocation4]
    $region5: #{tpu_custom_call.1} parent=1 // pred_fallthru
      _
    // Predicated region
    $region6: #{tpu_custom_call.1} parent=1 // pred_check
      _
    $region7: #{tpu_custom_call.1} parent=1 // pred_check_branch
      %28 = sbr.rel (0) target = $region9
    $region8: #{tpu_custom_call.1} parent=1 // pred_region
      %30 = vsyncadd [#allocation7], 0
      %s31 = sshll.u32 %s1, 4
      %s32 = int_to_ptr.hbm [resolvable:$true] %s31
      %s33 = sshll.u32 [#allocation6], 4
      %s34 = int_to_ptr.vmem [resolvable:$true] %s33
      %39 = dma.hbm_to_vmem [thread:$0]  %s32, 256, %s34, [#allocation7], 64, 64, 4
    $region9: #{tpu_custom_call.1} parent=1 // pred_fallthru
      _
    // Predicated region
    $region10: #{tpu_custom_call.1} parent=1 // pred_check
      _
    $region11: #{tpu_custom_call.1} parent=1 // pred_check_branch
      %41 = sbr.rel (0) target = $region13
    $region12: #{tpu_custom_call.1} parent=1 // pred_region
      _
    $region13: #{tpu_custom_call.1} parent=1 // pred_fallthru
      _
    // Predicated region
    $region14: #{tpu_custom_call.1} parent=1 // pred_check
      _
    $region15: #{tpu_custom_call.1} parent=1 // pred_check_branch
      %43 = sbr.rel (0) target = $region17
    $region16: #{tpu_custom_call.1} parent=1 // pred_region
      %45 = vsyncadd [#allocation7], 0
      %s46 = sshll.u32 %s3, 4
      %s47 = int_to_ptr.hbm [resolvable:$true] %s46
      %s48 = sshll.u32 [#allocation8], 4
      %s49 = int_to_ptr.vmem [resolvable:$true] %s48
      %54 = dma.hbm_to_vmem [thread:$0]  %s47, 1024, %s49, [#allocation7], 64, 64, 4
    $region17: #{tpu_custom_call.1} parent=1 // pred_fallthru
      _
    // Predicated region
    $region18: #{tpu_custom_call.1} parent=1 // pred_check
      _
    $region19: #{tpu_custom_call.1} parent=1 // pred_check_branch
      %56 = sbr.rel (0) target = $region21
    $region20: #{tpu_custom_call.1} parent=1 // pred_region
      _
    $region21: #{tpu_custom_call.1} parent=1 // pred_fallthru
      _
    // Predicated region
    $region22: #{tpu_custom_call.1} parent=1 // pred_check
      _
    $region23: #{tpu_custom_call.1} parent=1 // pred_check_branch
      %58 = sbr.rel (0) target = $region25
    $region24: #{tpu_custom_call.1} parent=1 // pred_region
      _
    $region25: #{tpu_custom_call.1} parent=1 // pred_fallthru
      _
    // Predicated region
    $region26: #{tpu_custom_call.1} parent=1 // pred_check
      _
    $region27: #{tpu_custom_call.1} parent=1 // pred_check_branch
      %60 = sbr.rel (0) target = $region29
    $region28: #{tpu_custom_call.1} parent=1 // pred_region
      _
    $region29: #{tpu_custom_call.1} parent=1 // pred_fallthru
      _
    // Predicated region
    $region30: #{tpu_custom_call.1} parent=1 // pred_check
      _
    $region31: #{tpu_custom_call.1} parent=1 // pred_check_branch
      %62 = sbr.rel (0) target = $region33
    $region32: #{tpu_custom_call.1} parent=1 // pred_region
      %64 = dma.done [#allocation4], 128
    $region33: #{tpu_custom_call.1} parent=1 // pred_fallthru
      _
    // Predicated region
    $region34: #{tpu_custom_call.1} parent=1 // pred_check
      _
    $region35: #{tpu_custom_call.1} parent=1 // pred_check_branch
      %66 = sbr.rel (0) target = $region37
    $region36: #{tpu_custom_call.1} parent=1 // pred_region
      %68 = dma.done [#allocation7], 256
    $region37: #{tpu_custom_call.1} parent=1 // pred_fallthru
      _
    // Predicated region
    $region38: #{tpu_custom_call.1} parent=1 // pred_check
      _
    $region39: #{tpu_custom_call.1} parent=1 // pred_check_branch
      %70 = sbr.rel (0) target = $region41
    $region40: #{tpu_custom_call.1} parent=1 // pred_region
      %72 = dma.done [#allocation7], 1024
    $region41: #{tpu_custom_call.1} parent=1 // pred_fallthru
      _
    %v74 = vld [vmem:[#allocation3] sm:$0xff]
    %v75 = vpack.c.bf16 %v74, %v74
    %v76 = vld [vmem:[#allocation6] sm:$0xf]
    %v77 = vld [vmem:[#allocation6 + $0x4] sm:$0xf]
    %v78 = vld [vmem:[#allocation6 + $0x8] sm:$0xf]
    %v79 = vld [vmem:[#allocation6 + $0xc] sm:$0xf]
    %v80 = vld [vmem:[%s2] sm:$0x1]
    %v82 = vperm.slane %v80, 0
    %v88 = vunpack.c.l.b16 %v76
    %v89 = vunpack.c.l.b16 %v77
    %v90 = vunpack.c.l.b16 %v78
    %v91 = vunpack.c.l.b16 %v79
    %v92 = vpack.c.b16 %v89, %v88
    %v93 = vpack.c.b16 %v91, %v90
    %vm96 = vcmask 261120
    %v98 = vsel %vm96, %v75, 0
    %100 = vmatpush.bf16.msra.mxu0 0
    %101 = vmatpush.bf16.msra.mxu0 0
    %102 = vmatpush.bf16.msra.mxu0 0
    %103 = vmatpush.bf16.msra.mxu0 0
    %104 = vmatpush.bf16.msra.mxu0 0
    %105 = vmatpush.bf16.msra.mxu0 0
    %106 = vmatpush.bf16.msra.mxu0 %v93
    %107 = vmatpush.bf16.msra.mxu0 %v92
    %108 = vmatmul.bf16.gmra.mxu0 %v98
    %v109 = vpop.f32.mrf.mxu0
    %v110 = vadd.f32 %v82, %v109
    %v111 = vpop.f32.mrf.mxu0
    %112 = vdwg.mxu0
    %v113 = vmax.f32 %v110, 0.0
    %v114 = vpack.c.bf16 %v113, %v113
    %v115 = vld [vmem:[#allocation8] sm:$0xf]
    %v116 = vld [vmem:[#allocation8 + $0x4] sm:$0xf]
    %v117 = vld [vmem:[#allocation8 + $0x8] sm:$0xf]
    %v118 = vld [vmem:[#allocation8 + $0xc] sm:$0xf]
    %v119 = vld [vmem:[#allocation8 + $0x10] sm:$0xf]
    %v120 = vld [vmem:[#allocation8 + $0x14] sm:$0xf]
    %v121 = vld [vmem:[#allocation8 + $0x18] sm:$0xf]
    %v122 = vld [vmem:[#allocation8 + $0x1c] sm:$0xf]
    %v123 = vld [vmem:[#allocation8 + $0x20] sm:$0xf]
    %v124 = vld [vmem:[#allocation8 + $0x24] sm:$0xf]
    %v125 = vld [vmem:[#allocation8 + $0x28] sm:$0xf]
    %v126 = vld [vmem:[#allocation8 + $0x2c] sm:$0xf]
    %v127 = vld [vmem:[#allocation8 + $0x30] sm:$0xf]
    %v128 = vld [vmem:[#allocation8 + $0x34] sm:$0xf]
    %v129 = vld [vmem:[#allocation8 + $0x38] sm:$0xf]
    %v130 = vld [vmem:[#allocation8 + $0x3c] sm:$0xf]
    %v131 = vld [vmem:[%s4] sm:$0x1]
    %v133 = vperm.slane %v131, 0
    %v151 = vunpack.c.l.b16 %v115
    %v152 = vunpack.c.l.b16 %v116
    %v153 = vunpack.c.l.b16 %v117
    %v154 = vunpack.c.l.b16 %v118
    %v155 = vunpack.c.l.b16 %v119
    %v156 = vunpack.c.l.b16 %v120
    %v157 = vunpack.c.l.b16 %v121
    %v158 = vunpack.c.l.b16 %v122
    %v159 = vunpack.c.l.b16 %v123
    %v160 = vunpack.c.l.b16 %v124
    %v161 = vunpack.c.l.b16 %v125
    %v162 = vunpack.c.l.b16 %v126
    %v163 = vunpack.c.l.b16 %v127
    %v164 = vunpack.c.l.b16 %v128
    %v165 = vunpack.c.l.b16 %v129
    %v166 = vunpack.c.l.b16 %v130
    %v167 = vpack.c.b16 %v152, %v151
    %v168 = vpack.c.b16 %v154, %v153
    %v169 = vpack.c.b16 %v156, %v155
    %v170 = vpack.c.b16 %v158, %v157
    %v171 = vpack.c.b16 %v160, %v159
    %v172 = vpack.c.b16 %v162, %v161
    %v173 = vpack.c.b16 %v164, %v163
    %v174 = vpack.c.b16 %v166, %v165
    %183 = vmatpush.bf16.msra.mxu0 %v174
    %184 = vmatpush.bf16.msra.mxu0 %v173
    %185 = vmatpush.bf16.msra.mxu0 %v172
    %186 = vmatpush.bf16.msra.mxu0 %v171
    %187 = vmatpush.bf16.msra.mxu0 %v170
    %188 = vmatpush.bf16.msra.mxu0 %v169
    %189 = vmatpush.bf16.msra.mxu0 %v168
    %190 = vmatpush.bf16.msra.mxu0 %v167
    %191 = vmatmul.bf16.gmra.mxu0 %v114
    %v192 = vpop.f32.mrf.mxu0
    %v193 = vadd.f32 %v133, %v192
    %v194 = vpop.f32.mrf.mxu0
    %195 = vdwg.mxu0
    %v196 = vmax.f32 %v193, 0.0
    %v197 = vld [vmem:[%s5] sm:$0xf]
    %v198 = vpack.c.bf16 %v196, %v196
    %199 = vmatpush.bf16.xpose.msra.mxu0 0
    %200 = vmatpush.bf16.xpose.msra.mxu0 0
    %201 = vmatpush.bf16.xpose.msra.mxu0 0
    %202 = vmatpush.bf16.xpose.msra.mxu0 0
    %203 = vmatpush.bf16.xpose.msra.mxu0 0
    %204 = vmatpush.bf16.xpose.msra.mxu0 0
    %205 = vmatpush.bf16.xpose.msra.mxu0 0
    %206 = vmatpush.bf16.xpose.msra.mxu0 %v198
    %207 = vmatmul.bf16.gmra.mxu0 %v197
    %v208 = vpop.f32.mrf.mxu0
    %v209 = vadd.f32 0.0, %v208
    %v210 = vpop.f32.mrf.mxu0
    %211 = vdwg.mxu0
    %s212 = sld [smem:[#allocation2]]
    %v213 = vstv %s212
    %v214 = vadd.f32 %v209, %v213
    %vm215 = vcmask 57344
    %216 = vst.msk [vmem:[#allocation9] sm:$0x1] %vm215, %v214
    // Predicated region
    $region42: #{tpu_custom_call.1} parent=1 // pred_check
      _
    $region43: #{tpu_custom_call.1} parent=1 // pred_check_branch
      %218 = sbr.rel (0) target = $region45
    $region44: #{tpu_custom_call.1} parent=1 // pred_region
      %220 = vsyncadd [#allocation5], 0
      %s222 = sshll.u32 [#allocation9], 4
      %s223 = int_to_ptr.vmem [resolvable:$true] %s222
      %s224 = sshll.u32 %s7, 4
      %s225 = int_to_ptr.hbm [resolvable:$true] %s224
      %227 = dma.vmem_to_hbm [thread:$0]  %s223, 16, %s225, [#allocation5]
    $region45: #{tpu_custom_call.1} parent=1 // pred_fallthru
      _
    // Predicated region
    $region46: #{tpu_custom_call.1} parent=1 // pred_check
      _
    $region47: #{tpu_custom_call.1} parent=1 // pred_check_branch
      %229 = sbr.rel (0) target = $region49
    $region48: #{tpu_custom_call.1} parent=1 // pred_region
      %231 = dma.done [#allocation5], 16
    $region49: #{tpu_custom_call.1} parent=1 // pred_fallthru
      _
    %232 = vsyncpa [#allocation4], 1
    %233 = vsyncpa [#allocation7], 1
    %234 = vsyncpa [#allocation5], 1

</llo_original>
